<compile_context>
chip_gen: v6e
topology: v6e:2x2x1
jax: 0.10.0
libtpu: 0.0.40
codegen_flags: <defaults>
</compile_context>

<pallas_src>
import functools

import jax
import jax.numpy as jnp
from jax import lax
from jax.experimental import pallas as pl
from jax.experimental.pallas import tpu as pltpu

_LANE = 128
_SUBLANE = 8


def _round_up(v, m):
    return (v + m - 1) // m * m


def _hw_config():
    """Returns (num_splits, vmem_capacity_bytes, combined_block_target_bytes)."""
    vmem_cap = 64 << 20          # conservative default (v7x per-TC physical)
    num_splits = 1
    target = 6 << 20             # combined (x + t) bytes per block
    try:
        vmem_cap = int(getattr(pltpu.get_tpu_info(), "vmem_capacity_bytes",
                               vmem_cap))
    except Exception:
        pass
    try:
        kind = jax.devices()[0].device_kind.lower()
        if "v7" in kind:
            num_splits = 2       # two TensorCores per chip
            target = 6 << 20     # ~4 MiB f32 x + ~2 MiB bf16 t per block
        elif "v6" in kind:
            target = 10 << 20
        elif "v5" in kind:
            target = 6 << 20
    except Exception:
        pass
    return num_splits, vmem_cap, target


def _focal_loss_kernel(x_ref, t_ref, out_ref, *, gamma, binary_target,
                       tiles_per_split, block_rows, n_valid, need_row_mask):
    i = pl.program_id(0)          # parallel split axis (megacore on v7x)
    j = pl.program_id(1)          # serial reduction axis

    @pl.when(j == 0)
    def _():
        out_ref[...] = jnp.zeros_like(out_ref)

    # bf16 inputs are supported (halves DMA traffic); compute stays f32.
    x = x_ref[...].astype(jnp.float32)
    t = t_ref[...].astype(jnp.float32)

    # softplus(-x) = max(-x, 0) + log(1 + exp(-|x|))
    e_x = jnp.exp(-jnp.abs(x))
    log1p_ex = jnp.log(1.0 + e_x)
    loss = x - x * t + jnp.maximum(-x, 0.0) + log1p_ex

    # invprobs = logsigmoid(z), z = -x * (2t - 1)
    z = -x * (t * 2.0 - 1.0)
    if binary_target:
        # For t in {0,1}: |z| == |x|, so reuse exp(-|x|) / log1p(exp(-|x|)).
        e_z, log1p_ez = e_x, log1p_ex
    else:
        e_z = jnp.exp(-jnp.abs(z))
        log1p_ez = jnp.log(1.0 + e_z)

    if gamma == 2.0:
        # exp(2*logsigmoid(z)) == sigmoid(z)^2.  EUP vrcp + one Newton step
        # (2 cheap VPU ops) restores full f32 accuracy without a VPU divide.
        d = 1.0 + e_z
        inv = pl.reciprocal(d, approx=True)
        inv = inv * (2.0 - d * inv)
        sig = jnp.where(z >= 0.0, 1.0, e_z) * inv
        factor = sig * sig
    else:
        invprobs = jnp.minimum(z, 0.0) - log1p_ez
        factor = jnp.exp(invprobs * gamma)

    loss = factor * loss

    def _fold(v):
        # (block_rows, C) -> (8, C): pure element-wise (VPU) adds.
        return jnp.sum(
            v.reshape(block_rows // _SUBLANE, _SUBLANE, v.shape[-1]), axis=0)

    if need_row_mask:
        row0 = (i * tiles_per_split + j) * block_rows
        crosses = row0 + block_rows > n_valid   # block contains padded rows

        @pl.when(crosses)
        def _():
            # Mask BEFORE accumulating: out-of-range block contents are
            # garbage (possibly Inf/NaN through exp); select discards them.
            rows = lax.broadcasted_iota(jnp.int32, loss.shape, 0) + row0
            out_ref[...] += _fold(jnp.where(rows < n_valid, loss, 0.0))

        @pl.when(jnp.logical_not(crosses))
        def _():
            out_ref[...] += _fold(loss)
    else:
        out_ref[...] += _fold(loss)


def focal_loss(x, target, gamma=2.0, block_rows=None, binary_target=True):
    if x.shape != target.shape:
        raise ValueError(
            "Target size ({}) must be the same as input size ({})".format(
                target.shape, x.shape))
    n, c = x.shape
    num_splits, vmem_cap, combined_target = _hw_config()

    # Ship 0/1 labels as bf16 (exact) to cut HBM read traffic; compute is f32.
    if binary_target and target.dtype == jnp.float32:
        target = target.astype(jnp.bfloat16)
    # TODO(synk): optionally accept bf16 `x` too if the accuracy budget allows.

    c_lanes = _round_up(c, _LANE)     # VMEM footprint of the lane dimension
    bytes_per_row = c_lanes * (jnp.dtype(x.dtype).itemsize +
                               jnp.dtype(target.dtype).itemsize)

    rows_per_split = pl.cdiv(n, num_splits)
    if block_rows is None:
        max_rows = max(_SUBLANE,
                       (combined_target // bytes_per_row) // _SUBLANE * _SUBLANE)
        max_rows = min(max_rows, 16384)   # bound unroll / temp pressure
        block_rows = min(max_rows, _round_up(rows_per_split, _SUBLANE))
    block_rows = max(_SUBLANE, _round_up(block_rows, _SUBLANE))

    tiles_per_split = pl.cdiv(rows_per_split, block_rows)
    grid_rows = num_splits * tiles_per_split * block_rows   # >= n, no jnp.pad

    kernel = functools.partial(
        _focal_loss_kernel,
        gamma=float(gamma),
        binary_target=bool(binary_target),
        tiles_per_split=tiles_per_split,
        block_rows=block_rows,
        n_valid=n,
        need_row_mask=(grid_rows != n),
    )

    # Double-buffered inputs + resident (8, C) output block, plus headroom
    # for element-wise temporaries; kept well under physical VMEM (64 MiB v7x).
    usage = 2 * block_rows * bytes_per_row + 2 * _SUBLANE * c_lanes * 4
    vmem_limit = min(max(usage + (24 << 20), 32 << 20), (vmem_cap * 3) // 4)
    vmem_limit = max(vmem_limit, usage + (4 << 20))

    in_map = lambda i, j: (i * tiles_per_split + j, 0)
    # NOTE: on v7x the leading "parallel" axis is intended to shard the two
    # TensorCores; verify in xprof and switch to pltpu.CORE_PARALLEL (or
    # pl.core_map over a 2-core mesh) if it executes serially.
    partials = pl.pallas_call(
        kernel,
        out_shape=jax.ShapeDtypeStruct((num_splits, _SUBLANE, c), jnp.float32),
        grid_spec=pltpu.PrefetchScalarGridSpec(
            num_scalar_prefetch=0,
            grid=(num_splits, tiles_per_split),
            in_specs=[
                pl.BlockSpec((block_rows, c), in_map),   # full-extent class dim
                pl.BlockSpec((block_rows, c), in_map),
            ],
            out_specs=pl.BlockSpec((None, _SUBLANE, c), lambda i, j: (i, 0, 0)),
        ),
        compiler_params=pltpu.CompilerParams(
            dimension_semantics=("parallel", "arbitrary"),
            vmem_limit_bytes=int(vmem_limit)),
    )(x, target)

    # Single cross-lane reduce + mean over rows, done once outside the kernel.
    # TODO(synk): for N >> 1e7 consider a per-split double accumulation.
    return jnp.sum(partials) / n


def _focal_loss_ref(x, target, gamma=2.0):
    max_val = jnp.maximum(-x, 0.0)
    loss = x - x * target + max_val + jnp.log(
        jnp.exp(-max_val) + jnp.exp(-x - max_val))
    invprobs = jax.nn.log_sigmoid(-x * (target * 2.0 - 1.0))
    loss = jnp.exp(invprobs * gamma) * loss
    return jnp.mean(jnp.sum(loss, axis=1))


if __name__ == "__main__":
    key = jax.random.PRNGKey(0)
    k1, k2, k3, k4 = jax.random.split(key, 4)

    # Case 1: lane-aligned shapes, gamma == 2 (vrcp path), binary bf16 target.
    N, C = 16, 128
    x = jax.random.normal(k1, (N, C), dtype=jnp.float32) * 2.0
    target = (jax.random.uniform(k2, (N, C)) > 0.5).astype(jnp.float32)
    out = jax.block_until_ready(focal_loss(x, target, gamma=2.0))
    ref = _focal_loss_ref(x, target, gamma=2.0)
    assert jnp.allclose(out, ref, atol=1e-4, rtol=1e-4), (out, ref)

    # Case 2: unaligned N and C (no padding: full-extent class blocks +
    # masked partially-OOB row block), non-default gamma, and the general
    # (non-binary-optimised) transcendental path.
    N2, C2 = 10, 96
    x2 = jax.random.normal(k3, (N2, C2), dtype=jnp.float32) * 2.0
    target2 = (jax.random.uniform(k4, (N2, C2)) > 0.5).astype(jnp.float32)
    out2 = jax.block_until_ready(
        focal_loss(x2, target2, gamma=1.5, binary_target=False))
    ref2 = _focal_loss_ref(x2, target2, gamma=1.5)
    assert jnp.allclose(out2, ref2, atol=1e-4, rtol=1e-4), (out2, ref2)

    # Case 3: unaligned shapes with gamma == 2 and the binary fast path.
    out3 = jax.block_until_ready(focal_loss(x2, target2, gamma=2.0))
    ref3 = _focal_loss_ref(x2, target2, gamma=2.0)
    assert jnp.allclose(out3, ref3, atol=1e-4, rtol=1e-4), (out3, ref3)

    print("KERNEL_OK")
</pallas_src>

<mosaic_0001>
module attributes {stable_mosaic.version = 11 : i64} {
  func.func @_focal_loss_kernel(%arg0: i32, %arg1: i32, %arg2: memref<16x128xf32, #tpu.memory_space<vmem>>, %arg3: memref<16x128xbf16, #tpu.memory_space<vmem>>, %arg4: memref<1x8x128xf32, #tpu.memory_space<vmem>>) attributes {dimension_semantics = [#tpu.dimension_semantics<parallel>, #tpu.dimension_semantics<arbitrary>], iteration_bounds = array<i64: 1, 1>, scalar_prefetch = 0 : i64, scratch_operands = 0 : i64, tpu.core_type = #tpu.core_type<tc>, window_params = [{transform_indices = @transform_0, window_bounds = array<i64: 16, 128>}, {transform_indices = @transform_1, window_bounds = array<i64: 16, 128>}, {transform_indices = @transform_2, window_bounds = array<i64: 1, 8, 128>}]} {
    %c0_i32 = arith.constant 0 : i32
    %0 = arith.cmpi eq, %arg1, %c0_i32 : i32
    %1 = arith.extui %0 : i1 to i32
    %c0_i32_0 = arith.constant 0 : i32
    %2 = arith.cmpi ne, %1, %c0_i32_0 : i32
    scf.if %2 {
      %cst_21 = arith.constant 0.000000e+00 : f32
      %50 = vector.broadcast %cst_21 : f32 to vector<8x128xf32>
      %c0_22 = arith.constant 0 : index
      %c0_23 = arith.constant 0 : index
      %c0_24 = arith.constant 0 : index
      %51 = vector.load %arg4[%c0_22, %c0_23, %c0_24] : memref<1x8x128xf32, #tpu.memory_space<vmem>>, vector<1x8x128xf32>
      %52 = vector.shape_cast %51 : vector<1x8x128xf32> to vector<8x128xf32>
      %53 = vector.shape_cast %50 : vector<8x128xf32> to vector<1x8x128xf32>
      tpu.vector_store %arg4[%c0_22, %c0_23, %c0_24], %53 {strides = array<i32>} : memref<1x8x128xf32, #tpu.memory_space<vmem>>, vector<1x8x128xf32>,
    } else {
    }
    %c0 = arith.constant 0 : index
    %c0_1 = arith.constant 0 : index
    %3 = vector.load %arg2[%c0, %c0_1] : memref<16x128xf32, #tpu.memory_space<vmem>>, vector<16x128xf32>
    %c0_2 = arith.constant 0 : index
    %c0_3 = arith.constant 0 : index
    %4 = vector.load %arg3[%c0_2, %c0_3] : memref<16x128xbf16, #tpu.memory_space<vmem>>, vector<16x128xbf16>
    %5 = arith.extf %4 : vector<16x128xbf16> to vector<16x128xf32>
    %6 = math.absf %3 : vector<16x128xf32>
    %cst = arith.constant 0.000000e+00 : f32
    %7 = vector.broadcast %cst : f32 to vector<16x128xf32>
    %8 = arith.subf %7, %6 : vector<16x128xf32>
    %9 = math.exp %8 : vector<16x128xf32>
    %cst_4 = arith.constant 1.000000e+00 : f32
    %10 = vector.broadcast %cst_4 : f32 to vector<16x128xf32>
    %11 = arith.addf %10, %9 : vector<16x128xf32>
    %12 = math.log %11 : vector<16x128xf32>
    %13 = arith.mulf %3, %5 : vector<16x128xf32>
    %14 = arith.subf %3, %13 : vector<16x128xf32>
    %cst_5 = arith.constant 0.000000e+00 : f32
    %15 = vector.broadcast %cst_5 : f32 to vector<16x128xf32>
    %16 = arith.subf %15, %3 : vector<16x128xf32>
    %cst_6 = arith.constant 0.000000e+00 : f32
    %17 = vector.broadcast %cst_6 : f32 to vector<16x128xf32>
    %18 = arith.maximumf %16, %17 : vector<16x128xf32>
    %19 = arith.addf %14, %18 : vector<16x128xf32>
    %20 = arith.addf %19, %12 : vector<16x128xf32>
    %cst_7 = arith.constant 0.000000e+00 : f32
    %21 = vector.broadcast %cst_7 : f32 to vector<16x128xf32>
    %22 = arith.subf %21, %3 : vector<16x128xf32>
    %cst_8 = arith.constant 2.000000e+00 : f32
    %23 = vector.broadcast %cst_8 : f32 to vector<16x128xf32>
    %24 = arith.mulf %5, %23 : vector<16x128xf32>
    %cst_9 = arith.constant 1.000000e+00 : f32
    %25 = vector.broadcast %cst_9 : f32 to vector<16x128xf32>
    %26 = arith.subf %24, %25 : vector<16x128xf32>
    %27 = arith.mulf %22, %26 : vector<16x128xf32>
    %cst_10 = arith.constant 1.000000e+00 : f32
    %28 = vector.broadcast %cst_10 : f32 to vector<16x128xf32>
    %29 = arith.addf %28, %9 : vector<16x128xf32>
    %30 = tpu.reciprocal %29 {approx = true} : vector<16x128xf32> -> vector<16x128xf32>
    %31 = arith.mulf %29, %30 : vector<16x128xf32>
    %cst_11 = arith.constant 2.000000e+00 : f32
    %32 = vector.broadcast %cst_11 : f32 to vector<16x128xf32>
    %33 = arith.subf %32, %31 : vector<16x128xf32>
    %34 = arith.mulf %30, %33 : vector<16x128xf32>
    %cst_12 = arith.constant 0.000000e+00 : f32
    %35 = vector.broadcast %cst_12 : f32 to vector<16x128xf32>
    %36 = arith.cmpf oge, %27, %35 : vector<16x128xf32>
    %cst_13 = arith.constant 1.000000e+00 : f32
    %37 = vector.broadcast %cst_13 : f32 to vector<16x128xf32>
    %38 = arith.select %36, %37, %9 : vector<16x128xi1>, vector<16x128xf32>
    %39 = arith.mulf %38, %34 : vector<16x128xf32>
    %40 = arith.mulf %39, %39 : vector<16x128xf32>
    %41 = arith.mulf %40, %20 : vector<16x128xf32>
    %c0_14 = arith.constant 0 : index
    %c0_15 = arith.constant 0 : index
    %c0_16 = arith.constant 0 : index
    %42 = vector.load %arg4[%c0_14, %c0_15, %c0_16] : memref<1x8x128xf32, #tpu.memory_space<vmem>>, vector<1x8x128xf32>
    %43 = vector.shape_cast %42 : vector<1x8x128xf32> to vector<8x128xf32>
    %44 = vector.shape_cast %41 : vector<16x128xf32> to vector<2x8x128xf32>
    %cst_17 = arith.constant dense<0.000000e+00> : vector<8x128xf32>
    %45 = vector.multi_reduction <add>, %44, %cst_17 [0] : vector<2x8x128xf32> to vector<8x128xf32>
    %46 = arith.addf %43, %45 : vector<8x128xf32>
    %c0_18 = arith.constant 0 : index
    %c0_19 = arith.constant 0 : index
    %c0_20 = arith.constant 0 : index
    %47 = vector.load %arg4[%c0_18, %c0_19, %c0_20] : memref<1x8x128xf32, #tpu.memory_space<vmem>>, vector<1x8x128xf32>
    %48 = vector.shape_cast %47 : vector<1x8x128xf32> to vector<8x128xf32>
    %49 = vector.shape_cast %46 : vector<8x128xf32> to vector<1x8x128xf32>
    tpu.vector_store %arg4[%c0_18, %c0_19, %c0_20], %49 {strides = array<i32>} : memref<1x8x128xf32, #tpu.memory_space<vmem>>, vector<1x8x128xf32>,
    return
  }
  func.func @transform_0(%arg0: i32, %arg1: i32) -> (i32, i32) {
    %c1_i32 = arith.constant 1 : i32
    %0 = arith.muli %arg0, %c1_i32 : i32
    %1 = arith.addi %0, %arg1 : i32
    %c0_i32 = arith.constant 0 : i32
    %c0_i32_0 = arith.constant 0 : i32
    return %1, %c0_i32 : i32, i32
  }
  func.func @transform_1(%arg0: i32, %arg1: i32) -> (i32, i32) {
    %c1_i32 = arith.constant 1 : i32
    %0 = arith.muli %arg0, %c1_i32 : i32
    %1 = arith.addi %0, %arg1 : i32
    %c0_i32 = arith.constant 0 : i32
    %c0_i32_0 = arith.constant 0 : i32
    return %1, %c0_i32 : i32, i32
  }
  func.func @transform_2(%arg0: i32, %arg1: i32) -> (i32, i32, i32) {
    %c0_i32 = arith.constant 0 : i32
    %c0_i32_0 = arith.constant 0 : i32
    %c0_i32_1 = arith.constant 0 : i32
    return %arg0, %c0_i32, %c0_i32_0 : i32, i32, i32
  }
}

</mosaic_0001>

<llo_original>
// kernel: tpu_custom_call.1
$region0: #{tpu_custom_call.1}
  #allocation0 [shape = 'u32[]', space=smem, size = 0x4, offset = 0x4, fixed_abs, tag = 'smem constant byte address 0x4 - core index']
  #allocation1 [shape = 'u32[144,128]{1,0:T(1,128)}', space=vmem, size = 0x12000, scoped, tag = 'internal scratch']
  %s0 = inlined_call_operand.hbm [shape: f32[16,128], index: 0, kind: input, shape index: {}]
  %s1 = inlined_call_operand.hbm [shape: bf16[16,128], index: 1, kind: input, shape index: {}]
  %s2 = inlined_call_operand.hbm [shape: f32[1,8,128], index: 2, kind: output, shape index: {}]
  %s3 = sld [smem:[#allocation0]]
  $region30: #{tpu_custom_call.1} parent=0
    _
  %s5 = ssub.s32 1, %s3
  %s6 = scalar_select 0, %s5, %s3
  $region1: #{tpu_custom_call.1} parent=0
    #allocation2 [shape = 'u8[8192]{0}', space=vmem, size = 0x2000, scoped, tag = 'input window, operand 0, single buffered']
    #allocation3 [shape = 's32[1]{0}', space=sflag, size = 0x4, scoped, tag = 'scoped memory for tpu_custom_call.1']
    #allocation4 [shape = 's32[1]{0}', space=sflag, size = 0x4, scoped, tag = 'scoped memory for tpu_custom_call.1']
    #allocation5 [shape = 'u8[4096]{0}', space=vmem, size = 0x1000, scoped, tag = 'input window, operand 1, single buffered']
    #allocation6 [shape = 's32[1]{0}', space=sflag, size = 0x4, scoped, tag = 'scoped memory for tpu_custom_call.1']
    #allocation7 [shape = 'u8[4096]{0}', space=vmem, size = 0x1000, scoped, tag = 'output window, operand 0, single buffered']
    %7 = vsyncpa [#allocation3], 0
    %8 = vsyncpa [#allocation6], 0
    %9 = vsyncpa [#allocation4], 0
    // Predicated region
    $region2: #{tpu_custom_call.1} parent=1 // pred_check
      _
    $region3: #{tpu_custom_call.1} parent=1 // pred_check_branch
      %11 = sbr.rel (0) target = $region5
    $region4: #{tpu_custom_call.1} parent=1 // pred_region
      %s12 = sadd.s32 0, 0
      %s13 = smul.u32 2, %s12
      %s15 = ssub.s32 256, 256
      %16 = vsyncadd [#allocation3], %s15
      %s17 = smul.addr %s13, 128
      %s18 = scalar_lea.hbm %s0, %s17
      %s19 = sshll.u32 [#allocation2], 4
      %s20 = int_to_ptr.vmem [resolvable:$true] %s19
      %25 = dma.hbm_to_vmem [thread:$0]  %s18, 256, %s20, [#allocation3], 128, 128, 8
    $region5: #{tpu_custom_call.1} parent=1 // pred_fallthru
      _
    // Predicated region
    $region6: #{tpu_custom_call.1} parent=1 // pred_check
      _
    $region7: #{tpu_custom_call.1} parent=1 // pred_check_branch
      %27 = sbr.rel (0) target = $region9
    $region8: #{tpu_custom_call.1} parent=1 // pred_region
      %s28 = sadd.s32 0, 0
      %s29 = smul.u32 2, %s28
      %s31 = ssub.s32 128, 128
      %32 = vsyncadd [#allocation6], %s31
      %s33 = smul.addr %s29, 64
      %s34 = scalar_lea.hbm %s1, %s33
      %s35 = sshll.u32 [#allocation5], 4
      %s36 = int_to_ptr.vmem [resolvable:$true] %s35
      %41 = dma.hbm_to_vmem [thread:$0]  %s34, 128, %s36, [#allocation6], 64, 64, 4
    $region9: #{tpu_custom_call.1} parent=1 // pred_fallthru
      _
    // Predicated region
    $region10: #{tpu_custom_call.1} parent=1 // pred_check
      _
    $region11: #{tpu_custom_call.1} parent=1 // pred_check_branch
      %43 = sbr.rel (0) target = $region13
    $region12: #{tpu_custom_call.1} parent=1 // pred_region
      %44 = dma.done [#allocation3], 256
    $region13: #{tpu_custom_call.1} parent=1 // pred_fallthru
      _
    // Predicated region
    $region14: #{tpu_custom_call.1} parent=1 // pred_check
      _
    $region15: #{tpu_custom_call.1} parent=1 // pred_check_branch
      %46 = sbr.rel (0) target = $region17
    $region16: #{tpu_custom_call.1} parent=1 // pred_region
      %47 = dma.done [#allocation6], 128
    $region17: #{tpu_custom_call.1} parent=1 // pred_fallthru
      _
    %s48 = sadd.s32 0, 0
    %s49 = smul.u32 2, %s48
    %s50 = sadd.s32 0, 0
    %s51 = smul.u32 2, %s50
    %p52 = scmp.eq.s32.totalorder 0, 0
    // Predicated region
    $region18: #{tpu_custom_call.1} parent=1 // pred_check
      %p53 = pneg %p52
    $region19: #{tpu_custom_call.1} parent=1 // pred_check_branch
      %55 = sbr.rel (%p53) target = $region21
    $region20: #{tpu_custom_call.1} parent=1 // pred_region
      %56 = vst [vmem:[#allocation7] sm:$0xff] 0.0
    $region21: #{tpu_custom_call.1} parent=1 // pred_fallthru
      _
    %v57 = vld [vmem:[#allocation2] sm:$0xff]
    %v58 = vld [vmem:[#allocation2 + $0x8] sm:$0xff]
    %v59 = vld [vmem:[#allocation5] sm:$0xf]
    %v60 = vld [vmem:[#allocation5 + $0x4] sm:$0xf]
    %v61 = vunpack.c.l.bf16 %v59
    %v62 = vunpack.c.l.bf16 %v60
    %v63 = vand.u32 2147483647, %v57
    %v64 = vand.u32 2147483647, %v58
    %v65 = vsub.f32 0.0, %v63
    %v66 = vsub.f32 0.0, %v64
    %v67 = vmul.f32 %v65, 1.442695
    %v68 = vpow.pop %v67
    %v69 = vmul.f32 %v66, 1.442695
    %v70 = vpow.pop %v69
    %v71 = vadd.f32 %v68, 1.0
    %v72 = vadd.f32 %v70, 1.0
    %v73 = vlog2.pop %v71
    %v74 = vmul.f32 %v73, 0.6931472
    %v75 = vlog2.pop %v72
    %v76 = vmul.f32 %v75, 0.6931472
    %v77 = vmul.f32 %v57, %v61
    %v78 = vmul.f32 %v58, %v62
    %v79 = vsub.f32 %v57, %v77
    %v80 = vsub.f32 %v58, %v78
    %v81 = vsub.f32 0.0, %v57
    %v82 = vsub.f32 0.0, %v58
    %v83 = vmax.f32 %v81, 0.0
    %v84 = vmax.f32 %v82, 0.0
    %v85 = vadd.f32 %v79, %v83
    %v86 = vadd.f32 %v80, %v84
    %v87 = vadd.f32 %v85, %v74
    %v88 = vadd.f32 %v86, %v76
    %v89 = vmul.f32 %v61, 2.0
    %v90 = vmul.f32 %v62, 2.0
    %v91 = vsub.f32 %v89, 1.0
    %v92 = vsub.f32 %v90, 1.0
    %v93 = vmul.f32 %v81, %v91
    %v94 = vmul.f32 %v82, %v92
    %v95 = vrcp.pop %v71
    %v96 = vrcp.pop %v72
    %v97 = vmul.f32 %v71, %v95
    %v98 = vmul.f32 %v72, %v96
    %v99 = vsub.f32 2.0, %v97
    %v100 = vsub.f32 2.0, %v98
    %v101 = vmul.f32 %v95, %v99
    %v102 = vmul.f32 %v96, %v100
    %vm103 = vcmp.ge.f32.partialorder %v93, 0.0
    %vm104 = vcmp.ge.f32.partialorder %v94, 0.0
    %v105 = vsel %vm103, 1.0, %v68
    %v106 = vsel %vm104, 1.0, %v70
    %v107 = vmul.f32 %v105, %v101
    %v108 = vmul.f32 %v106, %v102
    %v109 = vmul.f32 %v107, %v107
    %v110 = vmul.f32 %v108, %v108
    %v111 = vmul.f32 %v109, %v87
    %v112 = vmul.f32 %v110, %v88
    %v113 = vld [vmem:[#allocation7] sm:$0xff]
    %v114 = vadd.f32 %v111, %v112
    %v115 = vadd.f32 %v113, %v114
    %116 = vst [vmem:[#allocation7] sm:$0xff] %v115
    // Predicated region
    $region22: #{tpu_custom_call.1} parent=1 // pred_check
      _
    $region23: #{tpu_custom_call.1} parent=1 // pred_check_branch
      %118 = sbr.rel (0) target = $region25
    $region24: #{tpu_custom_call.1} parent=1 // pred_region
      %s120 = ssub.s32 128, 128
      %121 = vsyncadd [#allocation4], %s120
      %s123 = sshll.u32 [#allocation7], 4
      %s124 = int_to_ptr.vmem [resolvable:$true] %s123
      %126 = dma.vmem_to_hbm [thread:$0]  %s124, 128, %s2, [#allocation4]
    $region25: #{tpu_custom_call.1} parent=1 // pred_fallthru
      _
    // Predicated region
    $region26: #{tpu_custom_call.1} parent=1 // pred_check
      _
    $region27: #{tpu_custom_call.1} parent=1 // pred_check_branch
      %128 = sbr.rel (0) target = $region29
    $region28: #{tpu_custom_call.1} parent=1 // pred_region
      %129 = dma.done [#allocation4], 128
    $region29: #{tpu_custom_call.1} parent=1 // pred_fallthru
      _
    %130 = vsyncpa [#allocation3], 1
    %131 = vsyncpa [#allocation6], 1
    %132 = vsyncpa [#allocation4], 1

</llo_original>
